<compile_context>
chip_gen: v7x
topology: tpu7x:2x2x1
jax: 0.10.0
libtpu: 0.0.40
codegen_flags: <defaults>
</compile_context>

<pallas_src>
import jax
import jax.numpy as jnp
import numpy as np
from jax import lax
from jax.experimental import pallas as pl
from jax.experimental.pallas import tpu as pltpu


# ---------------------------------------------------------------------------
# Small helpers
# ---------------------------------------------------------------------------
def _round_up(n, m):
    return ((n + m - 1) // m) * m


def _pad_to(a, axis, target):
    pad = target - a.shape[axis]
    if pad <= 0:
        return a
    widths = [(0, 0)] * a.ndim
    widths[axis] = (0, pad)
    return jnp.pad(a, widths)


def _largest_divisor_leq(n, cap):
    cap = max(1, min(cap, n))
    for c in range(cap, 0, -1):
        if n % c == 0:
            return c
    return 1


def _largest_mult128_divisor_leq(n, cap):
    best = 128
    m = 128
    while m <= min(cap, n):
        if n % m == 0:
            best = m
        m += 128
    return best


def _vmem_limit_bytes():
    # Generation-aware budget: ~48 MiB on v7x (64 MiB physical), ~96 MiB on
    # v5e/v6e (128 MiB physical).
    try:
        cap = pltpu.get_tpu_info().vmem_capacity_bytes
    except Exception:  # interpret mode / older API
        cap = 128 * 1024 * 1024
    return max(32 * 1024 * 1024, min(100 * 1024 * 1024, (cap * 3) // 4))


def _block_spec(block_shape, index_map, buffers=None):
    """BlockSpec helper; buffers=1 single-buffers grid-invariant operands."""
    if buffers is None:
        return pl.BlockSpec(block_shape, index_map)
    try:
        return pl.BlockSpec(block_shape, index_map, pipeline_mode=pl.Buffered(buffers))
    except (TypeError, AttributeError):  # older Pallas without pipeline_mode
        return pl.BlockSpec(block_shape, index_map)


# ---------------------------------------------------------------------------
# Kernel 1: hoisted input projection  GI = x @ W_i + b_i   (fully parallel)
#   x2d : (T_pad*B_pad, D),  W_i : (D, n_blk tile of 3Hp),  b_i : (1, 3Hp)
# ---------------------------------------------------------------------------
def _input_proj_kernel(x_ref, wi_ref, bi_ref, gi_ref):
    x = x_ref[...].astype(wi_ref.dtype)          # MXU inputs may be bf16
    acc = jnp.dot(x, wi_ref[...], preferred_element_type=jnp.float32)
    gi_ref[...] = (acc + bi_ref[...].astype(jnp.float32)).astype(gi_ref.dtype)


# ---------------------------------------------------------------------------
# Kernel 2: sequential GRU recurrence with auto-reset, Tc timesteps per grid
# step.  Grid = (num_batch_blocks, T_pad // Tc), semantics ("parallel","arbitrary").
# ---------------------------------------------------------------------------
def _gru_recurrent_kernel(gi_ref, keep_ref, h0_ref, wh_ref, bhn_ref, y_ref, h_state):
    c = pl.program_id(1)                 # time-chunk index (sequential axis)
    Tc, Bb, Hp = y_ref.shape

    @pl.when(c == 0)
    def _():
        h_state[...] = h0_ref[0].astype(jnp.float32)

    wh = wh_ref[...]                                   # (Hp, 3Hp), single-buffered
    # Hoist the (1,Hp)->(Bb,Hp) bias broadcast out of the step loop (JAX does
    # not CSE broadcast_in_dim).  b_hn must stay inside the r*(...) term.
    bhn = jnp.broadcast_to(bhn_ref[...].astype(jnp.float32), (Bb, Hp))

    def step(tt, h):
        # auto-reset: h <- h*(1 - on_reset[t]); keep is pre-broadcast & lane-dense.
        h_prev = h * keep_ref[tt].astype(jnp.float32)
        # One fused (Hp,3Hp) hidden matmul per step (r|z|n), f32 accumulation.
        gh = jnp.dot(h_prev.astype(wh.dtype), wh, preferred_element_type=jnp.float32)
        gi_t = gi_ref[tt].astype(jnp.float32)          # bf16 -> f32 upcast
        # Lane-aligned gate slices (Hp % 128 == 0).  sigmoid/tanh go to the EUP,
        # which is often the binding slot at moderate H (not the MXU).
        r = jax.nn.sigmoid(gi_t[:, 0:Hp] + gh[:, 0:Hp])
        z = jax.nn.sigmoid(gi_t[:, Hp:2 * Hp] + gh[:, Hp:2 * Hp])
        n = jnp.tanh(gi_t[:, 2 * Hp:3 * Hp] + r * (gh[:, 2 * Hp:3 * Hp] + bhn))
        h_new = n + z * (h_prev - n)                   # == (1-z)*n + z*h_prev
        y_ref[tt] = h_new.astype(y_ref.dtype)
        return h_new

    # fori_loop keeps LLO visibility; fully unroll only while per-step f32
    # intermediates (a few 3Hp-wide tiles) stay well inside the 64x4KiB vregs.
    full_unroll = (Bb * 3 * Hp * 4) <= 48 * 1024
    h = lax.fori_loop(0, Tc, step, h_state[...], unroll=Tc if full_unroll else 1)
    h_state[...] = h                                   # carry to next chunk


# ---------------------------------------------------------------------------
# Wrapper
# ---------------------------------------------------------------------------
def auto_reset_gru(x, h, params, on_reset=None, *, time_chunk=16,
                   num_batch_blocks=1, gi_dtype=jnp.bfloat16):
    """Pallas implementation of AutoResetRNN.forward (GRU, 1 layer, seq-first)."""
    T, B, D = x.shape
    H = h.shape[-1]
    Hp = _round_up(H, 128)              # lane-align gate slices & y stores
    H3p = 3 * Hp
    B_pad = _round_up(B, 8)             # f32 sublane count

    w_i, w_h = params["w_i"], params["w_h"]
    b_i = params["b_i"].astype(jnp.float32)
    b_h = params["b_h"].astype(jnp.float32)

    # Fold the r/z thirds of b_h into b_i (linear).  b_hn must NOT be folded:
    # PyTorch applies it inside r*(W_hn h + b_hn); it is passed separately.
    b_hr, b_hz, b_hn = jnp.split(b_h, 3, axis=-1)
    b_i_fused = b_i + jnp.concatenate([b_hr, b_hz, jnp.zeros_like(b_hn)], axis=-1)

    def pad_gates(m):                   # (..., 3H) -> (..., 3Hp), per-gate zero pad
        if Hp == H:
            return m
        gr, gz, gn = jnp.split(m, 3, axis=-1)
        return jnp.concatenate(
            [_pad_to(gr, -1, Hp), _pad_to(gz, -1, Hp), _pad_to(gn, -1, Hp)], axis=-1)

    w_i_p = pad_gates(w_i)                              # (D, 3Hp)
    w_h_p = _pad_to(pad_gates(w_h), 0, Hp)              # (Hp, 3Hp)
    b_i_p = pad_gates(b_i_fused)                        # (1, 3Hp) f32
    b_hn_p = _pad_to(b_hn, -1, Hp)                      # (1, Hp)  f32

    # Time chunking with tail padding (no silent Tc=1 fallback for awkward T).
    Tc = max(1, min(int(time_chunk), T))
    T_pad = _round_up(T, Tc)
    NC = T_pad // Tc

    x_p = _pad_to(_pad_to(x, 0, T_pad), 1, B_pad)       # (T_pad, B_pad, D)
    h_p = _pad_to(_pad_to(h, 1, B_pad), 2, Hp)          # (1, B_pad, Hp)

    # keep = 1 - on_reset, pre-broadcast to Hp lanes in the wrapper: dense DMA,
    # no per-step cross-lane broadcast on the serial path.  bf16 is exact {0,1}.
    if on_reset is None:
        keep = jnp.ones((T, B, 1), jnp.float32)
    else:
        keep = 1.0 - on_reset.astype(jnp.float32)
    keep = _pad_to(_pad_to(keep, 0, T_pad), 1, B_pad)
    keep_p = jnp.broadcast_to(keep, (T_pad, B_pad, Hp)).astype(jnp.bfloat16)

    # Megacore batch split only pays when each block still fills the MXU rows;
    # on 1-TC chips (v5e/v6e) keep a single block (default).
    if num_batch_blocks > 1:
        bb = B_pad // num_batch_blocks
        if (B_pad % num_batch_blocks != 0) or (bb % 8 != 0) or (bb < 256):
            num_batch_blocks = 1
    Bb = B_pad // num_batch_blocks

    vmem_limit = _vmem_limit_bytes()

    # ---- Kernel 1: GI = x @ W_i + b_i as a parallel mem-bound matmul --------
    M = T_pad * B_pad
    x2d = x_p.reshape(M, D)                              # free reshape in XLA
    t_rows = _largest_divisor_leq(T_pad, max(1, 2048 // B_pad))
    m_blk = B_pad * t_rows                               # ~2048-row tiles
    n_blk = _largest_mult128_divisor_leq(H3p, 512)       # N-tiling: W_i not resident
    gi2d = pl.pallas_call(
        _input_proj_kernel,
        out_shape=jax.ShapeDtypeStruct((M, H3p), gi_dtype),   # bf16 by default
        grid_spec=pltpu.PrefetchScalarGridSpec(
            num_scalar_prefetch=0,
            grid=(M // m_blk, H3p // n_blk),
            in_specs=[
                pl.BlockSpec((m_blk, D), lambda g, n: (g, 0)),   # x rows
                pl.BlockSpec((D, n_blk), lambda g, n: (0, n)),   # W_i (r|z|n) tile
                pl.BlockSpec((1, n_blk), lambda g, n: (0, n)),   # fused bias tile
            ],
            out_specs=pl.BlockSpec((m_blk, n_blk), lambda g, n: (g, n)),
        ),
        compiler_params=pltpu.CompilerParams(
            dimension_semantics=("parallel", "parallel"),
            vmem_limit_bytes=vmem_limit,
        ),
    )(x2d, w_i_p, b_i_p)
    gi = gi2d.reshape(T_pad, B_pad, H3p)                 # free reshape in XLA

    # ---- Kernel 2: sequential auto-reset GRU recurrence ----------------------
    y_p = pl.pallas_call(
        _gru_recurrent_kernel,
        out_shape=jax.ShapeDtypeStruct((T_pad, B_pad, Hp), x.dtype),
        grid_spec=pltpu.PrefetchScalarGridSpec(
            num_scalar_prefetch=0,
            grid=(num_batch_blocks, NC),
            in_specs=[
                pl.BlockSpec((Tc, Bb, H3p), lambda b, c: (c, b, 0)),   # GI chunk
                pl.BlockSpec((Tc, Bb, Hp), lambda b, c: (c, b, 0)),    # keep chunk
                pl.BlockSpec((1, Bb, Hp), lambda b, c: (0, b, 0)),     # h0
                _block_spec((Hp, H3p), lambda b, c: (0, 0), buffers=1),  # W_h (invariant)
                _block_spec((1, Hp), lambda b, c: (0, 0), buffers=1),    # b_hn (invariant)
            ],
            out_specs=pl.BlockSpec((Tc, Bb, Hp), lambda b, c: (c, b, 0)),  # y chunk
            scratch_shapes=[pltpu.VMEM((Bb, Hp), jnp.float32)],            # resident h
        ),
        compiler_params=pltpu.CompilerParams(
            dimension_semantics=("parallel", "arbitrary"),
            vmem_limit_bytes=vmem_limit,
        ),
    )(gi, keep_p, h_p, w_h_p, b_hn_p)

    # For a 1-layer GRU, y[t] == h_t, so the final hidden state is y[T-1];
    # padded batch rows / hidden lanes / tail timesteps are sliced off here.
    y = y_p[:T, :B, :H]
    h_out = y_p[T - 1:T, :B, :H]
    return y, h_out


# ---------------------------------------------------------------------------
# Pure-JAX reference matching torch.nn.GRU semantics (gate order r, z, n).
# Uses HIGHEST matmul precision so the reference itself is true-f32.
# ---------------------------------------------------------------------------
def _reference_gru(x, h, params, on_reset):
    T = x.shape[0]
    H = h.shape[-1]
    w_i = params["w_i"].astype(jnp.float32)
    w_h = params["w_h"].astype(jnp.float32)
    b_i = params["b_i"].astype(jnp.float32)
    b_h = params["b_h"].astype(jnp.float32)
    hi = lax.Precision.HIGHEST
    h_t = h[0]
    ys = []
    for t in range(T):
        h_prev = h_t * (1.0 - on_reset[t])
        gi = jnp.dot(x[t], w_i, precision=hi) + b_i
        gh = jnp.dot(h_prev, w_h, precision=hi) + b_h
        r = jax.nn.sigmoid(gi[:, 0:H] + gh[:, 0:H])
        z = jax.nn.sigmoid(gi[:, H:2 * H] + gh[:, H:2 * H])
        n = jnp.tanh(gi[:, 2 * H:3 * H] + r * gh[:, 2 * H:3 * H])
        h_t = (1.0 - z) * n + z * h_prev
        ys.append(h_t)
    return jnp.stack(ys, 0), h_t[None]


def init_gru_params(key, input_dim, hidden_dim, dtype=jnp.float32):
    """PyTorch-style GRU init, returned as fused/transposed (D,3H)/(H,3H) mats."""
    k = 1.0 / np.sqrt(hidden_dim)
    keys = jax.random.split(key, 4)
    w_ih = jax.random.uniform(keys[0], (3 * hidden_dim, input_dim), jnp.float32, -k, k)
    w_hh = jax.random.uniform(keys[1], (3 * hidden_dim, hidden_dim), jnp.float32, -k, k)
    b_ih = jax.random.uniform(keys[2], (3 * hidden_dim,), jnp.float32, -k, k)
    b_hh = jax.random.uniform(keys[3], (3 * hidden_dim,), jnp.float32, -k, k)
    return {
        "w_i": w_ih.T.astype(dtype),     # (D, 3H), gate order (r|z|n)
        "w_h": w_hh.T.astype(dtype),     # (H, 3H)
        "b_i": b_ih[None, :],            # (1, 3H), kept f32
        "b_h": b_hh[None, :],            # (1, 3H), kept f32
    }


if __name__ == "__main__":
    T, B, D_IN, H = 8, 4, 16, 32

    key = jax.random.PRNGKey(0)
    k_x, k_h, k_r, k_p = jax.random.split(key, 4)

    x = jax.random.normal(k_x, (T, B, D_IN), jnp.float32)
    h0 = jax.random.normal(k_h, (1, B, H), jnp.float32)
    on_reset = (jax.random.uniform(k_r, (T, B, 1)) < 0.25).astype(jnp.float32)

    params = init_gru_params(k_p, D_IN, H, dtype=jnp.float32)
    y_ref, h_ref = _reference_gru(x, h0, params, on_reset)

    # f32 weights + f32 GI.  Tolerance allows for reduced-precision f32 MXU
    # passes on some TPU generations / compiler defaults, while still catching
    # any structural bug (wrong gates / reset / padding give O(0.1-1) errors).
    y, h_out = auto_reset_gru(x, h0, params, on_reset, gi_dtype=jnp.float32)
    jax.block_until_ready((y, h_out))
    np.testing.assert_allclose(np.asarray(y), np.asarray(y_ref), atol=2e-2, rtol=2e-2)
    np.testing.assert_allclose(np.asarray(h_out), np.asarray(h_ref), atol=2e-2, rtol=2e-2)

    # Default path: GI stored/streamed in bf16 (halves the dominant HBM traffic).
    y_b, h_b = auto_reset_gru(x, h0, params, on_reset)
    jax.block_until_ready((y_b, h_b))
    np.testing.assert_allclose(np.asarray(y_b), np.asarray(y_ref), atol=5e-2, rtol=5e-2)
    np.testing.assert_allclose(np.asarray(h_b), np.asarray(h_ref), atol=5e-2, rtol=5e-2)

    # on_reset=None path (plain GRU over the whole sequence).
    y2, h_out2 = auto_reset_gru(x, h0, params, None, gi_dtype=jnp.float32)
    jax.block_until_ready((y2, h_out2))
    y2_ref, h2_ref = _reference_gru(x, h0, params, jnp.zeros((T, B, 1), jnp.float32))
    np.testing.assert_allclose(np.asarray(y2), np.asarray(y2_ref), atol=2e-2, rtol=2e-2)
    np.testing.assert_allclose(np.asarray(h_out2), np.asarray(h2_ref), atol=2e-2, rtol=2e-2)

    # Mixed precision: bf16 weights on the MXU, f32 state/elementwise math.
    params_bf16 = init_gru_params(k_p, D_IN, H, dtype=jnp.bfloat16)
    y3, h_out3 = auto_reset_gru(x, h0, params_bf16, on_reset)
    jax.block_until_ready((y3, h_out3))
    np.testing.assert_allclose(np.asarray(y3), np.asarray(y_ref), atol=5e-2, rtol=5e-2)
    np.testing.assert_allclose(np.asarray(h_out3), np.asarray(h_ref), atol=5e-2, rtol=5e-2)

    print("KERNEL_OK")
</pallas_src>

<mosaic_0001>
module attributes {stable_mosaic.version = 11 : i64} {
  func.func @_input_proj_kernel(%arg0: i32, %arg1: i32, %arg2: memref<64x16xf32, #tpu.memory_space<vmem>>, %arg3: memref<16x384xf32, #tpu.memory_space<vmem>>, %arg4: memref<1x384xf32, #tpu.memory_space<vmem>>, %arg5: memref<64x384xf32, #tpu.memory_space<vmem>>) attributes {dimension_semantics = [#tpu.dimension_semantics<parallel>, #tpu.dimension_semantics<parallel>], iteration_bounds = array<i64: 1, 1>, scalar_prefetch = 0 : i64, scratch_operands = 0 : i64, tpu.core_type = #tpu.core_type<tc>, window_params = [{transform_indices = @transform_0, window_bounds = array<i64: 64, 16>}, {transform_indices = @transform_1, window_bounds = array<i64: 16, 384>}, {transform_indices = @transform_2, window_bounds = array<i64: 1, 384>}, {transform_indices = @transform_3, window_bounds = array<i64: 64, 384>}]} {
    %c0 = arith.constant 0 : index
    %c0_0 = arith.constant 0 : index
    %0 = vector.load %arg2[%c0, %c0_0] : memref<64x16xf32, #tpu.memory_space<vmem>>, vector<64x16xf32>
    %c0_1 = arith.constant 0 : index
    %c0_2 = arith.constant 0 : index
    %1 = vector.load %arg3[%c0_1, %c0_2] : memref<16x384xf32, #tpu.memory_space<vmem>>, vector<16x384xf32>
    %cst = arith.constant dense<0.000000e+00> : vector<64x384xf32>
    %2 = tpu.matmul %0, %1, %cst {dimension_numbers = #tpu.dot_dimension_numbers<[1], [0], [0], [1], [0, 0, 1, 1], [], []>} : vector<64x16xf32>, vector<16x384xf32>, vector<64x384xf32> -> vector<64x384xf32>
    %c0_3 = arith.constant 0 : index
    %c0_4 = arith.constant 0 : index
    %3 = vector.load %arg4[%c0_3, %c0_4] : memref<1x384xf32, #tpu.memory_space<vmem>>, vector<1x384xf32>
    %4 = vector.broadcast %3 : vector<1x384xf32> to vector<64x384xf32>
    %5 = arith.addf %2, %4 : vector<64x384xf32>
    %c0_5 = arith.constant 0 : index
    %c0_6 = arith.constant 0 : index
    %6 = vector.load %arg5[%c0_5, %c0_6] : memref<64x384xf32, #tpu.memory_space<vmem>>, vector<64x384xf32>
    tpu.vector_store %arg5[%c0_5, %c0_6], %5 {strides = array<i32>} : memref<64x384xf32, #tpu.memory_space<vmem>>, vector<64x384xf32>,
    return
  }
  func.func @transform_0(%arg0: i32, %arg1: i32) -> (i32, i32) {
    %c0_i32 = arith.constant 0 : i32
    %c0_i32_0 = arith.constant 0 : i32
    return %arg0, %c0_i32 : i32, i32
  }
  func.func @transform_1(%arg0: i32, %arg1: i32) -> (i32, i32) {
    %c0_i32 = arith.constant 0 : i32
    %c0_i32_0 = arith.constant 0 : i32
    return %c0_i32, %arg1 : i32, i32
  }
  func.func @transform_2(%arg0: i32, %arg1: i32) -> (i32, i32) {
    %c0_i32 = arith.constant 0 : i32
    %c0_i32_0 = arith.constant 0 : i32
    return %c0_i32, %arg1 : i32, i32
  }
  func.func @transform_3(%arg0: i32, %arg1: i32) -> (i32, i32) {
    %c0_i32 = arith.constant 0 : i32
    return %arg0, %arg1 : i32, i32
  }
}

</mosaic_0001>

<llo_original>
// kernel: tpu_custom_call.1
$region0: #{tpu_custom_call.1}
  #allocation0 [shape = 'u32[]', space=smem, size = 0x4, offset = 0x4, fixed_abs, tag = 'smem constant byte address 0x4 - core index']
  #allocation1 [shape = 'u32[144,128]{1,0:T(1,128)}', space=vmem, size = 0x12000, scoped, tag = 'internal scratch']
  %s0 = inlined_call_operand.hbm [shape: f32[64,16], index: 0, kind: input, shape index: {}]
  %s1 = inlined_call_operand.hbm [shape: f32[16,384], index: 1, kind: input, shape index: {}]
  %s2 = inlined_call_operand.hbm [shape: f32[1,384], index: 2, kind: input, shape index: {}]
  %s3 = inlined_call_operand.hbm [shape: f32[64,384], index: 3, kind: output, shape index: {}]
  %s4 = sld [smem:[#allocation0]]
  $region34: #{tpu_custom_call.1} parent=0
    _
  %s6 = ssub.s32 1, %s4
  %s7 = scalar_select 0, %s6, %s4
  $region1: #{tpu_custom_call.1} parent=0
    #allocation2 [shape = 'u8[32768]{0}', space=vmem, size = 0x8000, scoped, tag = 'input window, operand 0, single buffered']
    #allocation3 [shape = 's32[1]{0}', space=sflag, size = 0x4, scoped, tag = 'scoped memory for tpu_custom_call.1']
    #allocation4 [shape = 's32[1]{0}', space=sflag, size = 0x4, scoped, tag = 'scoped memory for tpu_custom_call.1']
    #allocation5 [shape = 'u8[24576]{0}', space=vmem, size = 0x6000, scoped, tag = 'input window, operand 1, single buffered']
    #allocation6 [shape = 's32[1]{0}', space=sflag, size = 0x4, scoped, tag = 'scoped memory for tpu_custom_call.1']
    #allocation7 [shape = 'u8[1536]{0}', space=vmem, size = 0x800, scoped, tag = 'input window, operand 2, single buffered']
    #allocation8 [shape = 'u8[98304]{0}', space=vmem, size = 0x18000, scoped, tag = 'output window, operand 0, single buffered']
    %8 = vsyncpa [#allocation3], 0
    %9 = vsyncpa [#allocation6], 0
    %10 = vsyncpa [#allocation4], 0
    // Predicated region
    $region2: #{tpu_custom_call.1} parent=1 // pred_check
      _
    $region3: #{tpu_custom_call.1} parent=1 // pred_check_branch
      %12 = sbr.rel (0) target = $region5
    $region4: #{tpu_custom_call.1} parent=1 // pred_region
      %s14 = ssub.s32 1024, 1024
      %15 = vsyncadd [#allocation3], %s14
      %s16 = sshll.u32 [#allocation2], 4
      %s17 = int_to_ptr.vmem [resolvable:$true] %s16
      %22 = dma.hbm_to_vmem [thread:$0]  %s0, 1024, %s17, [#allocation3], 128, 128, 8
    $region5: #{tpu_custom_call.1} parent=1 // pred_fallthru
      _
    // Predicated region
    $region6: #{tpu_custom_call.1} parent=1 // pred_check
      _
    $region7: #{tpu_custom_call.1} parent=1 // pred_check_branch
      %24 = sbr.rel (0) target = $region9
    $region8: #{tpu_custom_call.1} parent=1 // pred_region
      %s26 = ssub.s32 768, 768
      %27 = vsyncadd [#allocation6], %s26
      %s28 = sshll.u32 [#allocation5], 4
      %s29 = int_to_ptr.vmem [resolvable:$true] %s28
      %34 = dma.hbm_to_vmem [thread:$0]  %s1, 768, %s29, [#allocation6], 384, 384, 24
    $region9: #{tpu_custom_call.1} parent=1 // pred_fallthru
      _
    // Predicated region
    $region10: #{tpu_custom_call.1} parent=1 // pred_check
      _
    $region11: #{tpu_custom_call.1} parent=1 // pred_check_branch
      %36 = sbr.rel (0) target = $region13
    $region12: #{tpu_custom_call.1} parent=1 // pred_region
      %s38 = ssub.s32 48, 48
      %39 = vsyncadd [#allocation6], %s38
      %s41 = sshll.u32 [#allocation7], 4
      %s42 = int_to_ptr.vmem [resolvable:$true] %s41
      %44 = dma.hbm_to_vmem [thread:$0]  %s2, 48, %s42, [#allocation6]
    $region13: #{tpu_custom_call.1} parent=1 // pred_fallthru
      _
    // Predicated region
    $region14: #{tpu_custom_call.1} parent=1 // pred_check
      _
    $region15: #{tpu_custom_call.1} parent=1 // pred_check_branch
      %46 = sbr.rel (0) target = $region17
    $region16: #{tpu_custom_call.1} parent=1 // pred_region
      %47 = dma.done [#allocation3], 1024
    $region17: #{tpu_custom_call.1} parent=1 // pred_fallthru
      _
    // Predicated region
    $region18: #{tpu_custom_call.1} parent=1 // pred_check
      _
    $region19: #{tpu_custom_call.1} parent=1 // pred_check_branch
      %49 = sbr.rel (0) target = $region21
    $region20: #{tpu_custom_call.1} parent=1 // pred_region
      %50 = dma.done [#allocation6], 768
    $region21: #{tpu_custom_call.1} parent=1 // pred_fallthru
      _
    // Predicated region
    $region22: #{tpu_custom_call.1} parent=1 // pred_check
      _
    $region23: #{tpu_custom_call.1} parent=1 // pred_check_branch
      %52 = sbr.rel (0) target = $region25
    $region24: #{tpu_custom_call.1} parent=1 // pred_region
      %53 = dma.done [#allocation6], 48
    $region25: #{tpu_custom_call.1} parent=1 // pred_fallthru
      _
    %v54 = vld [vmem:[#allocation2] sm:$0xff]
    %v55 = vld [vmem:[#allocation2 + $0x8] sm:$0xff]
    %v56 = vld [vmem:[#allocation2 + $0x10] sm:$0xff]
    %v57 = vld [vmem:[#allocation2 + $0x18] sm:$0xff]
    %v58 = vld [vmem:[#allocation2 + $0x20] sm:$0xff]
    %v59 = vld [vmem:[#allocation2 + $0x28] sm:$0xff]
    %v60 = vld [vmem:[#allocation2 + $0x30] sm:$0xff]
    %v61 = vld [vmem:[#allocation2 + $0x38] sm:$0xff]
    %v62 = vld [vmem:[#allocation5] sm:$0xff]
    %v63 = vld [vmem:[#allocation5 + $0x8] sm:$0xff]
    %v64 = vld [vmem:[#allocation5 + $0x10] sm:$0xff]
    %v65 = vld [vmem:[#allocation5 + $0x18] sm:$0xff]
    %v66 = vld [vmem:[#allocation5 + $0x20] sm:$0xff]
    %v67 = vld [vmem:[#allocation5 + $0x28] sm:$0xff]
    %v68 = vld [vmem:[#allocation7] sm:$0x7]
    %v70 = vlaneseq
    %v71 = vshrl.u32 %v70, 7
    %v72 = vsub.s32 0, %v71
    %v73 = vrot.slane %v68, %v72
    %v74 = vlaneseq
    %v75 = vshrl.u32 %v74, 7
    %v76 = vsub.s32 1, %v75
    %v77 = vrot.slane %v68, %v76
    %v78 = vlaneseq
    %v79 = vshrl.u32 %v78, 7
    %v80 = vsub.s32 2, %v79
    %v81 = vrot.slane %v68, %v80
    %vm85 = vcmask 130048
    %v87 = vsel %vm85, %v54, 0
    %v90 = vsel %vm85, %v55, 0
    %v93 = vsel %vm85, %v56, 0
    %v96 = vsel %vm85, %v57, 0
    %v99 = vsel %vm85, %v58, 0
    %v102 = vsel %vm85, %v59, 0
    %v105 = vsel %vm85, %v60, 0
    %v108 = vsel %vm85, %v61, 0
    %110 = vmatprep.subr.mxu0 %v63
    %111 = vmatpush1.msra.mxu0 %v62
    %112 = vmatprep.subr.mxu0 %v66
    %113 = vmatpush1.msra.mxu0 %v65
    %114 = vmatprep.subr.mxu0 0.0
    %115 = vmatpush1.msra.mxu0 0.0
    %116 = vmatprep.subr.mxu0 0.0
    %117 = vmatpush1.msra.mxu0 0.0
    %118 = vmatprep.subr.mxu0 0.0
    %119 = vmatpush1.msra.mxu0 0.0
    %120 = vmatprep.subr.mxu0 0.0
    %121 = vmatpush1.msra.mxu0 0.0
    %122 = vmatprep.subr.mxu0 0.0
    %123 = vmatpush1.msra.mxu0 0.0
    %124 = vmatprep.subr.mxu0 0.0
    %125 = vmatpush1.msra.mxu0 0.0
    %126 = vmatprep.subr.mxu0 0.0
    %127 = vmatpush1.msra.mxu0 0.0
    %128 = vmatprep.subr.mxu0 0.0
    %129 = vmatpush1.msra.mxu0 0.0
    %130 = vmatprep.subr.mxu0 0.0
    %131 = vmatpush1.msra.mxu0 0.0
    %132 = vmatprep.subr.mxu0 0.0
    %133 = vmatpush1.msra.mxu0 0.0
    %134 = vmatprep.subr.mxu0 0.0
    %135 = vmatpush1.msra.mxu0 0.0
    %136 = vmatprep.subr.mxu0 0.0
    %137 = vmatpush1.msra.mxu0 0.0
    %138 = vmatprep.subr.mxu0 0.0
    %139 = vmatpush1.msra.mxu0 0.0
    %140 = vmatprep.subr.mxu0 0.0
    %141 = vmatpush1.msra.mxu0 0.0
    %142 = vmatprep.subr.mxu0 0.0
    %143 = vmatpush1.msra.mxu0 0.0
    %144 = vmatprep.subr.mxu0 0.0
    %145 = vmatpush1.msra.mxu0 0.0
    %146 = vmatprep.subr.mxu0 0.0
    %147 = vmatpush1.msra.mxu0 0.0
    %148 = vmatprep.subr.mxu0 0.0
    %149 = vmatpush1.msra.mxu0 0.0
    %150 = vmatprep.subr.mxu0 0.0
    %151 = vmatpush1.msra.mxu0 0.0
    %152 = vmatprep.subr.mxu0 0.0
    %153 = vmatpush1.msra.mxu0 0.0
    %154 = vmatprep.subr.mxu0 0.0
    %155 = vmatpush1.msra.mxu0 0.0
    %156 = vmatprep.subr.mxu0 0.0
    %157 = vmatpush1.msra.mxu0 0.0
    %158 = vmatprep.subr.mxu0 0.0
    %159 = vmatpush1.msra.mxu0 0.0
    %160 = vmatprep.subr.mxu0 0.0
    %161 = vmatpush1.msra.mxu0 0.0
    %162 = vmatprep.subr.mxu0 0.0
    %163 = vmatpush1.msra.mxu0 0.0
    %164 = vmatprep.subr.mxu0 0.0
    %165 = vmatpush1.msra.mxu0 0.0
    %166 = vmatprep.subr.mxu0 0.0
    %167 = vmatpush1.msra.mxu0 0.0
    %168 = vmatprep.subr.mxu0 0.0
    %169 = vmatpush1.msra.mxu0 0.0
    %170 = vmatprep.subr.mxu0 0.0
    %171 = vmatpush1.msra.mxu0 0.0
    %172 = vmatprep.subr.mxu0 0.0
    %173 = vmatpush1.msra.mxu0 0.0
    %174 = vmatprep.mubr.f32.mxu0 0.0
    %175 = vmatmul.mubr.f32.gmra.mrb[0].mxu0 %v87
    %v176 = vpop.f32.mrb[0].mxu0
    %v177 = vadd.f32 %v73, %v176
    %v178 = vpop.f32.mrb[0].mxu0
    %v179 = vadd.f32 %v77, %v178
    %180 = vmatprep.mubr.f32.mxu0 0.0
    %181 = vmatmul.mubr.f32.gmra.mrb[0].mxu0 %v90
    %v182 = vpop.f32.mrb[0].mxu0
    %v183 = vadd.f32 %v73, %v182
    %v184 = vpop.f32.mrb[0].mxu0
    %v185 = vadd.f32 %v77, %v184
    %186 = vmatprep.mubr.f32.mxu0 0.0
    %187 = vmatmul.mubr.f32.gmra.mrb[0].mxu0 %v93
    %v188 = vpop.f32.mrb[0].mxu0
    %v189 = vadd.f32 %v73, %v188
    %v190 = vpop.f32.mrb[0].mxu0
    %v191 = vadd.f32 %v77, %v190
    %192 = vmatprep.mubr.f32.mxu0 0.0
    %193 = vmatmul.mubr.f32.gmra.mrb[0].mxu0 %v96
    %v194 = vpop.f32.mrb[0].mxu0
    %v195 = vadd.f32 %v73, %v194
    %v196 = vpop.f32.mrb[0].mxu0
    %v197 = vadd.f32 %v77, %v196
    %198 = vmatprep.mubr.f32.mxu0 0.0
    %199 = vmatmul.mubr.f32.gmra.mrb[0].mxu0 %v99
    %v200 = vpop.f32.mrb[0].mxu0
    %v201 = vadd.f32 %v73, %v200
    %v202 = vpop.f32.mrb[0].mxu0
    %v203 = vadd.f32 %v77, %v202
    %204 = vmatprep.mubr.f32.mxu0 0.0
    %205 = vmatmul.mubr.f32.gmra.mrb[0].mxu0 %v102
    %v206 = vpop.f32.mrb[0].mxu0
    %v207 = vadd.f32 %v73, %v206
    %v208 = vpop.f32.mrb[0].mxu0
    %v209 = vadd.f32 %v77, %v208
    %210 = vmatprep.mubr.f32.mxu0 0.0
    %211 = vmatmul.mubr.f32.gmra.mrb[0].mxu0 %v105
    %v212 = vpop.f32.mrb[0].mxu0
    %v213 = vadd.f32 %v73, %v212
    %v214 = vpop.f32.mrb[0].mxu0
    %v215 = vadd.f32 %v77, %v214
    %216 = vmatprep.mubr.f32.mxu0 0.0
    %217 = vmatmul.mubr.f32.gmra.mrb[0].mxu0 %v108
    %v218 = vpop.f32.mrb[0].mxu0
    %v219 = vadd.f32 %v73, %v218
    %v220 = vpop.f32.mrb[0].mxu0
    %v221 = vadd.f32 %v77, %v220
    %222 = vdwg.mxu0
    %223 = vmatprep.subr.mxu0 0.0
    %224 = vmatpush1.msra.mxu0 %v64
    %225 = vmatprep.subr.mxu0 0.0
    %226 = vmatpush1.msra.mxu0 %v67
    %227 = vmatprep.subr.mxu0 0.0
    %228 = vmatpush1.msra.mxu0 0.0
    %229 = vmatprep.subr.mxu0 0.0
    %230 = vmatpush1.msra.mxu0 0.0
    %231 = vmatprep.subr.mxu0 0.0
    %232 = vmatpush1.msra.mxu0 0.0
    %233 = vmatprep.subr.mxu0 0.0
    %234 = vmatpush1.msra.mxu0 0.0
    %235 = vmatprep.subr.mxu0 0.0
    %236 = vmatpush1.msra.mxu0 0.0
    %237 = vmatprep.subr.mxu0 0.0
    %238 = vmatpush1.msra.mxu0 0.0
    %239 = vmatprep.subr.mxu0 0.0
    %240 = vmatpush1.msra.mxu0 0.0
    %241 = vmatprep.subr.mxu0 0.0
    %242 = vmatpush1.msra.mxu0 0.0
    %243 = vmatprep.subr.mxu0 0.0
    %244 = vmatpush1.msra.mxu0 0.0
    %245 = vmatprep.subr.mxu0 0.0
    %246 = vmatpush1.msra.mxu0 0.0
    %247 = vmatprep.subr.mxu0 0.0
    %248 = vmatpush1.msra.mxu0 0.0
    %249 = vmatprep.subr.mxu0 0.0
    %250 = vmatpush1.msra.mxu0 0.0
    %251 = vmatprep.subr.mxu0 0.0
    %252 = vmatpush1.msra.mxu0 0.0
    %253 = vmatprep.subr.mxu0 0.0
    %254 = vmatpush1.msra.mxu0 0.0
    %255 = vmatprep.subr.mxu0 0.0
    %256 = vmatpush1.msra.mxu0 0.0
    %257 = vmatprep.subr.mxu0 0.0
    %258 = vmatpush1.msra.mxu0 0.0
    %259 = vmatprep.subr.mxu0 0.0
    %260 = vmatpush1.msra.mxu0 0.0
    %261 = vmatprep.subr.mxu0 0.0
    %262 = vmatpush1.msra.mxu0 0.0
    %263 = vmatprep.subr.mxu0 0.0
    %264 = vmatpush1.msra.mxu0 0.0
    %265 = vmatprep.subr.mxu0 0.0
    %266 = vmatpush1.msra.mxu0 0.0
    %267 = vmatprep.subr.mxu0 0.0
    %268 = vmatpush1.msra.mxu0 0.0
    %269 = vmatprep.subr.mxu0 0.0
    %270 = vmatpush1.msra.mxu0 0.0
    %271 = vmatprep.subr.mxu0 0.0
    %272 = vmatpush1.msra.mxu0 0.0
    %273 = vmatprep.subr.mxu0 0.0
    %274 = vmatpush1.msra.mxu0 0.0
    %275 = vmatprep.subr.mxu0 0.0
    %276 = vmatpush1.msra.mxu0 0.0
    %277 = vmatprep.subr.mxu0 0.0
    %278 = vmatpush1.msra.mxu0 0.0
    %279 = vmatprep.subr.mxu0 0.0
    %280 = vmatpush1.msra.mxu0 0.0
    %281 = vmatprep.subr.mxu0 0.0
    %282 = vmatpush1.msra.mxu0 0.0
    %283 = vmatprep.subr.mxu0 0.0
    %284 = vmatpush1.msra.mxu0 0.0
    %285 = vmatprep.subr.mxu0 0.0
    %286 = vmatpush1.msra.mxu0 0.0
    %287 = vmatprep.mubr.f32.mxu0 0.0
    %288 = vmatmul.mubr.f32.gmra.mrb[0].mxu0 %v87
    %v289 = vpop.f32.mrb[0].mxu0
    %v290 = vadd.f32 %v81, %v289
    %v291 = vpop.f32.mrb[0].mxu0
    %292 = vmatprep.mubr.f32.mxu0 0.0
    %293 = vmatmul.mubr.f32.gmra.mrb[0].mxu0 %v90
    %v294 = vpop.f32.mrb[0].mxu0
    %v295 = vadd.f32 %v81, %v294
    %v296 = vpop.f32.mrb[0].mxu0
    %297 = vmatprep.mubr.f32.mxu0 0.0
    %298 = vmatmul.mubr.f32.gmra.mrb[0].mxu0 %v93
    %v299 = vpop.f32.mrb[0].mxu0
    %v300 = vadd.f32 %v81, %v299
    %v301 = vpop.f32.mrb[0].mxu0
    %302 = vmatprep.mubr.f32.mxu0 0.0
    %303 = vmatmul.mubr.f32.gmra.mrb[0].mxu0 %v96
    %v304 = vpop.f32.mrb[0].mxu0
    %v305 = vadd.f32 %v81, %v304
    %v306 = vpop.f32.mrb[0].mxu0
    %307 = vmatprep.mubr.f32.mxu0 0.0
    %308 = vmatmul.mubr.f32.gmra.mrb[0].mxu0 %v99
    %v309 = vpop.f32.mrb[0].mxu0
    %v310 = vadd.f32 %v81, %v309
    %v311 = vpop.f32.mrb[0].mxu0
    %312 = vmatprep.mubr.f32.mxu0 0.0
    %313 = vmatmul.mubr.f32.gmra.mrb[0].mxu0 %v102
    %v314 = vpop.f32.mrb[0].mxu0
    %v315 = vadd.f32 %v81, %v314
    %v316 = vpop.f32.mrb[0].mxu0
    %317 = vmatprep.mubr.f32.mxu0 0.0
    %318 = vmatmul.mubr.f32.gmra.mrb[0].mxu0 %v105
    %v319 = vpop.f32.mrb[0].mxu0
    %v320 = vadd.f32 %v81, %v319
    %v321 = vpop.f32.mrb[0].mxu0
    %322 = vmatprep.mubr.f32.mxu0 0.0
    %323 = vmatmul.mubr.f32.gmra.mrb[0].mxu0 %v108
    %v324 = vpop.f32.mrb[0].mxu0
    %v325 = vadd.f32 %v81, %v324
    %v326 = vpop.f32.mrb[0].mxu0
    %327 = vdwg.mxu0
    %328 = vst [vmem:[#allocation8] sm:$0xff] %v177
    %329 = vst [vmem:[#allocation8 + $0x8] sm:$0xff] %v179
    %330 = vst [vmem:[#allocation8 + $0x10] sm:$0xff] %v290
    %331 = vst [vmem:[#allocation8 + $0x18] sm:$0xff] %v183
    %332 = vst [vmem:[#allocation8 + $0x20] sm:$0xff] %v185
    %333 = vst [vmem:[#allocation8 + $0x28] sm:$0xff] %v295
    %334 = vst [vmem:[#allocation8 + $0x30] sm:$0xff] %v189
    %335 = vst [vmem:[#allocation8 + $0x38] sm:$0xff] %v191
    %336 = vst [vmem:[#allocation8 + $0x40] sm:$0xff] %v300
    %337 = vst [vmem:[#allocation8 + $0x48] sm:$0xff] %v195
    %338 = vst [vmem:[#allocation8 + $0x50] sm:$0xff] %v197
    %339 = vst [vmem:[#allocation8 + $0x58] sm:$0xff] %v305
    %340 = vst [vmem:[#allocation8 + $0x60] sm:$0xff] %v201
    %341 = vst [vmem:[#allocation8 + $0x68] sm:$0xff] %v203
    %342 = vst [vmem:[#allocation8 + $0x70] sm:$0xff] %v310
    %343 = vst [vmem:[#allocation8 + $0x78] sm:$0xff] %v207
    %344 = vst [vmem:[#allocation8 + $0x80] sm:$0xff] %v209
    %345 = vst [vmem:[#allocation8 + $0x88] sm:$0xff] %v315
    %346 = vst [vmem:[#allocation8 + $0x90] sm:$0xff] %v213
    %347 = vst [vmem:[#allocation8 + $0x98] sm:$0xff] %v215
    %348 = vst [vmem:[#allocation8 + $0xa0] sm:$0xff] %v320
    %349 = vst [vmem:[#allocation8 + $0xa8] sm:$0xff] %v219
    %350 = vst [vmem:[#allocation8 + $0xb0] sm:$0xff] %v221
    %351 = vst [vmem:[#allocation8 + $0xb8] sm:$0xff] %v325
    // Predicated region
    $region26: #{tpu_custom_call.1} parent=1 // pred_check
      _
    $region27: #{tpu_custom_call.1} parent=1 // pred_check_branch
      %353 = sbr.rel (0) target = $region29
    $region28: #{tpu_custom_call.1} parent=1 // pred_region
      %s355 = ssub.s32 3072, 3072
      %356 = vsyncadd [#allocation4], %s355
      %s357 = sshll.u32 [#allocation8], 4
      %s358 = int_to_ptr.vmem [resolvable:$true] %s357
      %363 = dma.vmem_to_hbm [thread:$0]  %s358, 3072, %s3, [#allocation4], 384, 384, 24
    $region29: #{tpu_custom_call.1} parent=1 // pred_fallthru
      _
    // Predicated region
    $region30: #{tpu_custom_call.1} parent=1 // pred_check
      _
    $region31: #{tpu_custom_call.1} parent=1 // pred_check_branch
      %365 = sbr.rel (0) target = $region33
    $region32: #{tpu_custom_call.1} parent=1 // pred_region
      %366 = dma.done [#allocation4], 3072
    $region33: #{tpu_custom_call.1} parent=1 // pred_fallthru
      _
    %367 = vsyncpa [#allocation3], 1
    %368 = vsyncpa [#allocation6], 1
    %369 = vsyncpa [#allocation4], 1

</llo_original>
